<compile_context>
chip_gen: v7x
topology: tpu7x:2x2x1
jax: 0.10.0
libtpu: 0.0.40
codegen_flags: <defaults>
</compile_context>

<pallas_src>
import jax
import jax.numpy as jnp
from jax.experimental import pallas as pl
from jax.experimental.pallas import tpu as pltpu


def _fc_kernel(x_ref, w1_ref, w2_ref, w3_ref, w4_ref, b_ref, o_ref):
    # x_ref:  (D_in, Bt)       bf16, batch on lanes
    # w1..w3: (out, in)        bf16
    # w4_ref: (fc_dim//4, 1)   f32  (used on the VPU, not the MXU)
    # b_ref:  (fc_dim, 4)      f32, column j = bias of layer j (zero padded)
    b = b_ref[...]

    # fc1 + relu (bias add / relu in f32)
    h = jnp.dot(w1_ref[...], x_ref[...], preferred_element_type=jnp.float32)
    h = jnp.maximum(h + b[:, 0:1], 0.0)
    # fc2 + relu
    h = jnp.dot(w2_ref[...], h.astype(jnp.bfloat16),
                preferred_element_type=jnp.float32)
    h = jnp.maximum(h + b[: w2_ref.shape[0], 1:2], 0.0)
    # fc3 + relu
    h = jnp.dot(w3_ref[...], h.astype(jnp.bfloat16),
                preferred_element_type=jnp.float32)
    h = jnp.maximum(h + b[: w3_ref.shape[0], 2:3], 0.0)
    # fc4 (out_features == 1): VPU multiply + sublane reduce; an MXU pass
    # producing a single output column would pay full matmul latency for
    # 1/256th of the array.
    o = jnp.sum(h * w4_ref[...], axis=0, keepdims=True) + b[0:1, 3:4]
    o_ref[...] = o.astype(o_ref.dtype)


def _cdiv(a, b):
    return (a + b - 1) // b


def fc_forward(x, params, *, batch_tile=512):
    """Fused 4-layer MLP.  params = [(w_i, b_i)] with w_i: (out, in), b_i: (out,).
    x: (B, D_in) f32.  Returns (B, 1) f32."""
    (w1, b1), (w2, b2), (w3, b3), (w4, b4) = params
    B, d_in = x.shape
    fc_dim = w1.shape[0]
    assert w1.shape[1] == d_in

    # --- tiling: batch on lanes, biggest tile <= batch_tile; keep >= 2 grid
    # steps when there is enough work so the "parallel" batch axis can be
    # sharded across both TensorCores on v7x. Ragged batches are padded (and
    # the output sliced) rather than shrinking the tile. ---------------------
    lane = 128
    n_chunks = _cdiv(B, lane)                        # 128-lane batch chunks
    tile_chunks = max(1, min(batch_tile // lane, n_chunks))
    if n_chunks >= 2 and _cdiv(n_chunks, tile_chunks) < 2:
        tile_chunks = _cdiv(n_chunks, 2)
    grid_steps = _cdiv(n_chunks, tile_chunks)
    tile = tile_chunks * lane
    b_pad = grid_steps * tile                        # padded batch size

    # --- host-side layout plumbing (pad + transpose + bf16 for the MXU) -----
    x_pad = jnp.zeros((b_pad, d_in), x.dtype).at[:B].set(x)
    x_t = x_pad.astype(jnp.bfloat16).T               # (d_in, b_pad) lane-dense

    w1_b = w1.astype(jnp.bfloat16)
    w2_b = w2.astype(jnp.bfloat16)
    w3_b = w3.astype(jnp.bfloat16)
    w4_col = w4.reshape(-1, 1).astype(jnp.float32)   # (fc_dim//4, 1), stays f32

    # Pack the four biases into one small f32 block (fewer pipelined inputs /
    # DMA descriptors per grid step); column j = bias of layer j.
    b_packed = jnp.zeros((fc_dim, 4), jnp.float32)
    for j, bj in enumerate((b1, b2, b3, b4)):
        b_packed = b_packed.at[: bj.shape[0], j].set(bj.astype(jnp.float32))

    def full_block(a):
        # whole (small) array, same block every grid step
        return pl.BlockSpec(a.shape, lambda i: (0, 0))

    out_t = pl.pallas_call(
        _fc_kernel,
        out_shape=jax.ShapeDtypeStruct((1, b_pad), jnp.float32),
        grid_spec=pltpu.PrefetchScalarGridSpec(
            num_scalar_prefetch=0,
            grid=(grid_steps,),
            in_specs=[
                pl.BlockSpec((d_in, tile), lambda i: (0, i)),   # x tile
                full_block(w1_b), full_block(w2_b), full_block(w3_b),
                full_block(w4_col), full_block(b_packed),
            ],
            out_specs=pl.BlockSpec((1, tile), lambda i: (0, i)),
        ),
        compiler_params=pltpu.CompilerParams(
            dimension_semantics=("parallel",),
            # Explicit VMEM budget: even at batch_tile=1024 the double-buffered
            # x tile (1024x32 bf16 = 64 KiB) + weights are << 32 MiB, which is
            # safe on v5e/v6e/v7x.
            vmem_limit_bytes=32 * 1024 * 1024,
        ),
    )(x_t, w1_b, w2_b, w3_b, w4_col, b_packed)

    return out_t[:, :B].T                            # (B, 1) f32


def xavier_uniform(key, fan_in, fan_out):
    # matches torch.nn.init.xavier_uniform_ (gain=1); PyTorch (out, in) layout
    limit = (6.0 / (fan_in + fan_out)) ** 0.5
    return jax.random.uniform(key, (fan_out, fan_in), jnp.float32,
                              minval=-limit, maxval=limit)


def linear_bias(key, fan_in, fan_out):
    # PyTorch nn.Linear default bias init: U(-1/sqrt(fan_in), 1/sqrt(fan_in))
    bound = 1.0 / (fan_in ** 0.5)
    return jax.random.uniform(key, (fan_out,), jnp.float32,
                              minval=-bound, maxval=bound)


def make_params(key, user_question_dim, fc_dim):
    dims = [user_question_dim, fc_dim, fc_dim // 2, fc_dim // 4, 1]
    params = []
    for li in range(4):
        key, kw, kb = jax.random.split(key, 3)
        w = xavier_uniform(kw, dims[li], dims[li + 1])
        b = linear_bias(kb, dims[li], dims[li + 1])
        params.append((w, b))
    return params


def fc_reference(x, params):
    # Mirrors the kernel's precision: bf16 matmul inputs, f32 accumulation,
    # f32 bias/relu, f32 VPU-style reduce for fc4.
    (w1, b1), (w2, b2), (w3, b3), (w4, b4) = params

    def dense_bf16(h, w, b):
        h16 = h.astype(jnp.bfloat16).astype(jnp.float32)
        w16 = w.astype(jnp.bfloat16).astype(jnp.float32)
        return h16 @ w16.T + b

    h = jnp.maximum(dense_bf16(x, w1, b1), 0.0)
    h = jnp.maximum(dense_bf16(h, w2, b2), 0.0)
    h = jnp.maximum(dense_bf16(h, w3, b3), 0.0)
    return jnp.sum(h * w4.reshape(1, -1), axis=-1, keepdims=True) + b4


if __name__ == "__main__":
    user_question_dim = 32
    fc_dim = 32
    batch = 16

    key = jax.random.PRNGKey(0)
    key, kx = jax.random.split(key)
    x = jax.random.normal(kx, (batch, user_question_dim), jnp.float32)
    params = make_params(key, user_question_dim, fc_dim)

    out = fc_forward(x, params)
    out = jax.block_until_ready(out)

    ref = fc_reference(x, params)
    assert out.shape == (batch, 1), out.shape
    assert jnp.allclose(out, ref, atol=1e-3, rtol=1e-3), "mismatch vs reference"
    print("KERNEL_OK")
</pallas_src>

<mosaic_0001>
module attributes {stable_mosaic.version = 11 : i64} {
  func.func @_fc_kernel(%arg0: i32, %arg1: memref<32x128xbf16, #tpu.memory_space<vmem>>, %arg2: memref<32x32xbf16, #tpu.memory_space<vmem>>, %arg3: memref<16x32xbf16, #tpu.memory_space<vmem>>, %arg4: memref<8x16xbf16, #tpu.memory_space<vmem>>, %arg5: memref<8x1xf32, #tpu.memory_space<vmem>>, %arg6: memref<32x4xf32, #tpu.memory_space<vmem>>, %arg7: memref<1x128xf32, #tpu.memory_space<vmem>>) attributes {dimension_semantics = [#tpu.dimension_semantics<parallel>], iteration_bounds = array<i64: 1>, scalar_prefetch = 0 : i64, scratch_operands = 0 : i64, tpu.core_type = #tpu.core_type<tc>, window_params = [{transform_indices = @transform_0, window_bounds = array<i64: 32, 128>}, {pipeline_mode = #tpu.pipeline_mode<synchronous>, transform_indices = @transform_1, window_bounds = array<i64: 32, 32>}, {pipeline_mode = #tpu.pipeline_mode<synchronous>, transform_indices = @transform_2, window_bounds = array<i64: 16, 32>}, {pipeline_mode = #tpu.pipeline_mode<synchronous>, transform_indices = @transform_3, window_bounds = array<i64: 8, 16>}, {pipeline_mode = #tpu.pipeline_mode<synchronous>, transform_indices = @transform_4, window_bounds = array<i64: 8, 1>}, {pipeline_mode = #tpu.pipeline_mode<synchronous>, transform_indices = @transform_5, window_bounds = array<i64: 32, 4>}, {transform_indices = @transform_6, window_bounds = array<i64: 1, 128>}]} {
    %c0 = arith.constant 0 : index
    %c0_0 = arith.constant 0 : index
    %0 = vector.load %arg6[%c0, %c0_0] : memref<32x4xf32, #tpu.memory_space<vmem>>, vector<32x4xf32>
    %c0_1 = arith.constant 0 : index
    %c0_2 = arith.constant 0 : index
    %1 = vector.load %arg2[%c0_1, %c0_2] : memref<32x32xbf16, #tpu.memory_space<vmem>>, vector<32x32xbf16>
    %c0_3 = arith.constant 0 : index
    %c0_4 = arith.constant 0 : index
    %2 = vector.load %arg1[%c0_3, %c0_4] : memref<32x128xbf16, #tpu.memory_space<vmem>>, vector<32x128xbf16>
    %cst = arith.constant dense<0.000000e+00> : vector<32x128xf32>
    %3 = tpu.matmul %1, %2, %cst {dimension_numbers = #tpu.dot_dimension_numbers<[1], [0], [0], [1], [0, 0, 1, 1], [], []>} : vector<32x32xbf16>, vector<32x128xbf16>, vector<32x128xf32> -> vector<32x128xf32>
    %4 = vector.extract_strided_slice %0 {offsets = [0, 0], sizes = [32, 1], strides = [1, 1]} : vector<32x4xf32> to vector<32x1xf32>
    %5 = vector.broadcast %4 : vector<32x1xf32> to vector<32x128xf32>
    %6 = arith.addf %3, %5 : vector<32x128xf32>
    %cst_5 = arith.constant 0.000000e+00 : f32
    %7 = vector.broadcast %cst_5 : f32 to vector<32x128xf32>
    %8 = arith.maximumf %6, %7 : vector<32x128xf32>
    %c0_6 = arith.constant 0 : index
    %c0_7 = arith.constant 0 : index
    %9 = vector.load %arg3[%c0_6, %c0_7] : memref<16x32xbf16, #tpu.memory_space<vmem>>, vector<16x32xbf16>
    %10 = arith.truncf %8 : vector<32x128xf32> to vector<32x128xbf16>
    %cst_8 = arith.constant dense<0.000000e+00> : vector<16x128xf32>
    %11 = tpu.matmul %9, %10, %cst_8 {dimension_numbers = #tpu.dot_dimension_numbers<[1], [0], [0], [1], [0, 0, 1, 1], [], []>} : vector<16x32xbf16>, vector<32x128xbf16>, vector<16x128xf32> -> vector<16x128xf32>
    %12 = vector.extract_strided_slice %0 {offsets = [0, 1], sizes = [16, 1], strides = [1, 1]} : vector<32x4xf32> to vector<16x1xf32>
    %13 = vector.broadcast %12 : vector<16x1xf32> to vector<16x128xf32>
    %14 = arith.addf %11, %13 : vector<16x128xf32>
    %cst_9 = arith.constant 0.000000e+00 : f32
    %15 = vector.broadcast %cst_9 : f32 to vector<16x128xf32>
    %16 = arith.maximumf %14, %15 : vector<16x128xf32>
    %c0_10 = arith.constant 0 : index
    %c0_11 = arith.constant 0 : index
    %17 = vector.load %arg4[%c0_10, %c0_11] : memref<8x16xbf16, #tpu.memory_space<vmem>>, vector<8x16xbf16>
    %18 = arith.truncf %16 : vector<16x128xf32> to vector<16x128xbf16>
    %cst_12 = arith.constant dense<0.000000e+00> : vector<8x128xf32>
    %19 = tpu.matmul %17, %18, %cst_12 {dimension_numbers = #tpu.dot_dimension_numbers<[1], [0], [0], [1], [0, 0, 1, 1], [], []>} : vector<8x16xbf16>, vector<16x128xbf16>, vector<8x128xf32> -> vector<8x128xf32>
    %20 = vector.extract_strided_slice %0 {offsets = [0, 2], sizes = [8, 1], strides = [1, 1]} : vector<32x4xf32> to vector<8x1xf32>
    %21 = vector.broadcast %20 : vector<8x1xf32> to vector<8x128xf32>
    %22 = arith.addf %19, %21 : vector<8x128xf32>
    %cst_13 = arith.constant 0.000000e+00 : f32
    %23 = vector.broadcast %cst_13 : f32 to vector<8x128xf32>
    %24 = arith.maximumf %22, %23 : vector<8x128xf32>
    %c0_14 = arith.constant 0 : index
    %c0_15 = arith.constant 0 : index
    %25 = vector.load %arg5[%c0_14, %c0_15] : memref<8x1xf32, #tpu.memory_space<vmem>>, vector<8x1xf32>
    %26 = vector.broadcast %25 : vector<8x1xf32> to vector<8x128xf32>
    %27 = arith.mulf %24, %26 : vector<8x128xf32>
    %cst_16 = arith.constant dense<0.000000e+00> : vector<128xf32>
    %28 = vector.multi_reduction <add>, %27, %cst_16 [0] : vector<8x128xf32> to vector<128xf32>
    %29 = vector.shape_cast %28 : vector<128xf32> to vector<1x128xf32>
    %30 = vector.extract_strided_slice %0 {offsets = [0, 3], sizes = [1, 1], strides = [1, 1]} : vector<32x4xf32> to vector<1x1xf32>
    %31 = vector.broadcast %30 : vector<1x1xf32> to vector<1x128xf32>
    %32 = arith.addf %29, %31 : vector<1x128xf32>
    %c0_17 = arith.constant 0 : index
    %c0_18 = arith.constant 0 : index
    %33 = vector.load %arg7[%c0_17, %c0_18] : memref<1x128xf32, #tpu.memory_space<vmem>>, vector<1x128xf32>
    tpu.vector_store %arg7[%c0_17, %c0_18], %32 {strides = array<i32>} : memref<1x128xf32, #tpu.memory_space<vmem>>, vector<1x128xf32>,
    return
  }
  func.func @transform_0(%arg0: i32) -> (i32, i32) {
    %c0_i32 = arith.constant 0 : i32
    %c0_i32_0 = arith.constant 0 : i32
    return %c0_i32, %arg0 : i32, i32
  }
  func.func @transform_1(%arg0: i32) -> (i32, i32) {
    %c0_i32 = arith.constant 0 : i32
    %c0_i32_0 = arith.constant 0 : i32
    %c0_i32_1 = arith.constant 0 : i32
    return %c0_i32, %c0_i32_0 : i32, i32
  }
  func.func @transform_2(%arg0: i32) -> (i32, i32) {
    %c0_i32 = arith.constant 0 : i32
    %c0_i32_0 = arith.constant 0 : i32
    %c0_i32_1 = arith.constant 0 : i32
    return %c0_i32, %c0_i32_0 : i32, i32
  }
  func.func @transform_3(%arg0: i32) -> (i32, i32) {
    %c0_i32 = arith.constant 0 : i32
    %c0_i32_0 = arith.constant 0 : i32
    %c0_i32_1 = arith.constant 0 : i32
    return %c0_i32, %c0_i32_0 : i32, i32
  }
  func.func @transform_4(%arg0: i32) -> (i32, i32) {
    %c0_i32 = arith.constant 0 : i32
    %c0_i32_0 = arith.constant 0 : i32
    %c0_i32_1 = arith.constant 0 : i32
    return %c0_i32, %c0_i32_0 : i32, i32
  }
  func.func @transform_5(%arg0: i32) -> (i32, i32) {
    %c0_i32 = arith.constant 0 : i32
    %c0_i32_0 = arith.constant 0 : i32
    %c0_i32_1 = arith.constant 0 : i32
    return %c0_i32, %c0_i32_0 : i32, i32
  }
  func.func @transform_6(%arg0: i32) -> (i32, i32) {
    %c0_i32 = arith.constant 0 : i32
    %c0_i32_0 = arith.constant 0 : i32
    return %c0_i32, %arg0 : i32, i32
  }
}

</mosaic_0001>

<llo_original>
// kernel: tpu_custom_call.1
$region0: #{tpu_custom_call.1}
  #allocation0 [shape = 'u32[]', space=smem, size = 0x4, offset = 0x4, fixed_abs, tag = 'smem constant byte address 0x4 - core index']
  #allocation1 [shape = 'u32[144,128]{1,0:T(1,128)}', space=vmem, size = 0x12000, scoped, tag = 'internal scratch']
  %s0 = inlined_call_operand.vmem [shape: bf16[32,128], index: 0, kind: input, shape index: {}]
  %s1 = inlined_call_operand.vmem [shape: bf16[32,32], index: 1, kind: input, shape index: {}]
  %s2 = inlined_call_operand.vmem [shape: bf16[16,32], index: 2, kind: input, shape index: {}]
  %s3 = inlined_call_operand.vmem [shape: bf16[8,16], index: 3, kind: input, shape index: {}]
  %s4 = inlined_call_operand.vmem [shape: f32[8,1], index: 4, kind: input, shape index: {}]
  %s5 = inlined_call_operand.vmem [shape: f32[32,4], index: 5, kind: input, shape index: {}]
  %s6 = inlined_call_operand.hbm [shape: f32[1,128], index: 6, kind: output, shape index: {}]
  %s7 = sld [smem:[#allocation0]]
  $region34: #{tpu_custom_call.1} parent=0
    _
  %s9 = ssub.s32 1, %s7
  %s10 = scalar_select 0, %s9, %s7
  $region1: #{tpu_custom_call.1} parent=0
    #allocation2 [shape = 'u8[512]{0}', space=vmem, size = 0x400, scoped, tag = 'output window, operand 0, single buffered']
    #allocation3 [shape = 's32[1]{0}', space=sflag, size = 0x4, scoped, tag = 'scoped memory for tpu_custom_call.1']
    %11 = vsyncpa [#allocation3], 0
    // Predicated region
    $region2: #{tpu_custom_call.1} parent=1 // pred_check
      _
    $region3: #{tpu_custom_call.1} parent=1 // pred_check_branch
      %13 = sbr.rel (0) target = $region5
    $region4: #{tpu_custom_call.1} parent=1 // pred_region
      _
    $region5: #{tpu_custom_call.1} parent=1 // pred_fallthru
      _
    // Predicated region
    $region6: #{tpu_custom_call.1} parent=1 // pred_check
      _
    $region7: #{tpu_custom_call.1} parent=1 // pred_check_branch
      %15 = sbr.rel (0) target = $region9
    $region8: #{tpu_custom_call.1} parent=1 // pred_region
      _
    $region9: #{tpu_custom_call.1} parent=1 // pred_fallthru
      _
    // Predicated region
    $region10: #{tpu_custom_call.1} parent=1 // pred_check
      _
    $region11: #{tpu_custom_call.1} parent=1 // pred_check_branch
      %17 = sbr.rel (0) target = $region13
    $region12: #{tpu_custom_call.1} parent=1 // pred_region
      _
    $region13: #{tpu_custom_call.1} parent=1 // pred_fallthru
      _
    // Predicated region
    $region14: #{tpu_custom_call.1} parent=1 // pred_check
      _
    $region15: #{tpu_custom_call.1} parent=1 // pred_check_branch
      %19 = sbr.rel (0) target = $region17
    $region16: #{tpu_custom_call.1} parent=1 // pred_region
      _
    $region17: #{tpu_custom_call.1} parent=1 // pred_fallthru
      _
    // Predicated region
    $region18: #{tpu_custom_call.1} parent=1 // pred_check
      _
    $region19: #{tpu_custom_call.1} parent=1 // pred_check_branch
      %21 = sbr.rel (0) target = $region21
    $region20: #{tpu_custom_call.1} parent=1 // pred_region
      _
    $region21: #{tpu_custom_call.1} parent=1 // pred_fallthru
      _
    // Predicated region
    $region22: #{tpu_custom_call.1} parent=1 // pred_check
      _
    $region23: #{tpu_custom_call.1} parent=1 // pred_check_branch
      %23 = sbr.rel (0) target = $region25
    $region24: #{tpu_custom_call.1} parent=1 // pred_region
      _
    $region25: #{tpu_custom_call.1} parent=1 // pred_fallthru
      _
    %v25 = vld [vmem:[%s5] sm:$0xff]
    %v26 = vld [vmem:[%s5 + $0x8] sm:$0xff]
    %v27 = vld [vmem:[%s5 + $0x10] sm:$0xff]
    %v28 = vld [vmem:[%s5 + $0x18] sm:$0xff]
    %v29 = vld [vmem:[%s1] sm:$0xf]
    %v30 = vld [vmem:[%s1 + $0x4] sm:$0xf]
    %v31 = vld [vmem:[%s1 + $0x8] sm:$0xf]
    %v32 = vld [vmem:[%s1 + $0xc] sm:$0xf]
    %v33 = vld [vmem:[%s0] sm:$0xf]
    %v34 = vld [vmem:[%s0 + $0x4] sm:$0xf]
    %v35 = vld [vmem:[%s0 + $0x8] sm:$0xf]
    %v36 = vld [vmem:[%s0 + $0xc] sm:$0xf]
    %38 = vset.pattern.permute.xlu0 0
    %39 = vperm.xlu0 %38, %v25
    %v40 = vpop.permute.xlu0 %39
    %43 = vset.pattern.permute.xlu0 0
    %44 = vperm.xlu0 %43, %v26
    %v45 = vpop.permute.xlu0 %44
    %48 = vset.pattern.permute.xlu0 0
    %49 = vperm.xlu0 %48, %v27
    %v50 = vpop.permute.xlu0 %49
    %53 = vset.pattern.permute.xlu0 0
    %54 = vperm.xlu0 %53, %v28
    %v55 = vpop.permute.xlu0 %54
    %v61 = vunpack.c.l.b16 %v29
    %v62 = vunpack.c.l.b16 %v30
    %v63 = vunpack.c.l.b16 %v31
    %v64 = vunpack.c.l.b16 %v32
    %v65 = vpack.c.b16 %v62, %v61
    %v66 = vpack.c.b16 %v64, %v63
    %v71 = vunpack.c.l.b16 %v33
    %v72 = vunpack.c.l.b16 %v34
    %v73 = vunpack.c.l.b16 %v35
    %v74 = vunpack.c.l.b16 %v36
    %v75 = vpack.c.b16 %v72, %v71
    %v76 = vpack.c.b16 %v74, %v73
    %vm79 = vcmask 261120
    %v81 = vsel %vm79, %v65, 0
    %v84 = vsel %vm79, %v66, 0
    %86 = vmatprep.subr.bf16.mxu0 0
    %87 = vmatpush1.bf16.msra.mxu0 %v75
    %88 = vmatprep.subr.bf16.mxu0 0
    %89 = vmatpush1.bf16.msra.mxu0 %v76
    %90 = vmatprep.subr.bf16.mxu0 0
    %91 = vmatpush1.bf16.msra.mxu0 0
    %92 = vmatprep.subr.bf16.mxu0 0
    %93 = vmatpush1.bf16.msra.mxu0 0
    %94 = vmatprep.subr.bf16.mxu0 0
    %95 = vmatpush1.bf16.msra.mxu0 0
    %96 = vmatprep.subr.bf16.mxu0 0
    %97 = vmatpush1.bf16.msra.mxu0 0
    %98 = vmatprep.subr.bf16.mxu0 0
    %99 = vmatpush1.bf16.msra.mxu0 0
    %100 = vmatprep.subr.bf16.mxu0 0
    %101 = vmatpush1.bf16.msra.mxu0 0
    %102 = vmatprep.subr.bf16.mxu0 0
    %103 = vmatpush1.bf16.msra.mxu0 0
    %104 = vmatprep.subr.bf16.mxu0 0
    %105 = vmatpush1.bf16.msra.mxu0 0
    %106 = vmatprep.subr.bf16.mxu0 0
    %107 = vmatpush1.bf16.msra.mxu0 0
    %108 = vmatprep.subr.bf16.mxu0 0
    %109 = vmatpush1.bf16.msra.mxu0 0
    %110 = vmatprep.subr.bf16.mxu0 0
    %111 = vmatpush1.bf16.msra.mxu0 0
    %112 = vmatprep.subr.bf16.mxu0 0
    %113 = vmatpush1.bf16.msra.mxu0 0
    %114 = vmatprep.subr.bf16.mxu0 0
    %115 = vmatpush1.bf16.msra.mxu0 0
    %116 = vmatprep.subr.bf16.mxu0 0
    %117 = vmatpush1.bf16.msra.mxu0 0
    %118 = vmatprep.mubr.bf16.mxu0 0
    %119 = vmatmul.mubr.bf16.gmra.mrb[0].mxu0 %v81
    %v120 = vpop.f32.mrb[0].mxu0
    %v121 = vadd.f32 %v40, %v120
    %v122 = vpop.f32.mrb[0].mxu0
    %v123 = vpop.f32.mrb[0].mxu0
    %v124 = vadd.f32 %v45, %v123
    %v125 = vpop.f32.mrb[0].mxu0
    %126 = vmatprep.mubr.bf16.mxu0 0
    %127 = vmatmul.mubr.bf16.gmra.mrb[0].mxu0 %v84
    %v128 = vpop.f32.mrb[0].mxu0
    %v129 = vadd.f32 %v50, %v128
    %v130 = vpop.f32.mrb[0].mxu0
    %v131 = vpop.f32.mrb[0].mxu0
    %v132 = vadd.f32 %v55, %v131
    %v133 = vpop.f32.mrb[0].mxu0
    %134 = vdwg.mxu0
    %v135 = vmax.f32 %v121, 0.0
    %v136 = vmax.f32 %v124, 0.0
    %v137 = vmax.f32 %v129, 0.0
    %v138 = vmax.f32 %v132, 0.0
    %v139 = vld [vmem:[%s2] sm:$0xf]
    %v140 = vld [vmem:[%s2 + $0x4] sm:$0xf]
    %v141 = vpack.c.bf16 %v136, %v135
    %v142 = vpack.c.bf16 %v138, %v137
    %143 = vset.pattern.permute.xlu0 1
    %144 = vperm.xlu0 %143, %v25
    %v145 = vpop.permute.xlu0 %144
    %147 = vset.pattern.permute.xlu0 1
    %148 = vperm.xlu0 %147, %v26
    %v149 = vpop.permute.xlu0 %148
    %v153 = vunpack.c.l.b16 %v139
    %v154 = vunpack.c.l.b16 %v140
    %v155 = vpack.c.b16 %v154, %v153
    %v157 = vsel %vm79, %v155, 0
    %159 = vmatprep.subr.bf16.mxu0 0
    %160 = vmatpush1.bf16.msra.mxu0 %v141
    %161 = vmatprep.subr.bf16.mxu0 0
    %162 = vmatpush1.bf16.msra.mxu0 %v142
    %163 = vmatprep.subr.bf16.mxu0 0
    %164 = vmatpush1.bf16.msra.mxu0 0
    %165 = vmatprep.subr.bf16.mxu0 0
    %166 = vmatpush1.bf16.msra.mxu0 0
    %167 = vmatprep.subr.bf16.mxu0 0
    %168 = vmatpush1.bf16.msra.mxu0 0
    %169 = vmatprep.subr.bf16.mxu0 0
    %170 = vmatpush1.bf16.msra.mxu0 0
    %171 = vmatprep.subr.bf16.mxu0 0
    %172 = vmatpush1.bf16.msra.mxu0 0
    %173 = vmatprep.subr.bf16.mxu0 0
    %174 = vmatpush1.bf16.msra.mxu0 0
    %175 = vmatprep.subr.bf16.mxu0 0
    %176 = vmatpush1.bf16.msra.mxu0 0
    %177 = vmatprep.subr.bf16.mxu0 0
    %178 = vmatpush1.bf16.msra.mxu0 0
    %179 = vmatprep.subr.bf16.mxu0 0
    %180 = vmatpush1.bf16.msra.mxu0 0
    %181 = vmatprep.subr.bf16.mxu0 0
    %182 = vmatpush1.bf16.msra.mxu0 0
    %183 = vmatprep.subr.bf16.mxu0 0
    %184 = vmatpush1.bf16.msra.mxu0 0
    %185 = vmatprep.subr.bf16.mxu0 0
    %186 = vmatpush1.bf16.msra.mxu0 0
    %187 = vmatprep.subr.bf16.mxu0 0
    %188 = vmatpush1.bf16.msra.mxu0 0
    %189 = vmatprep.subr.bf16.mxu0 0
    %190 = vmatpush1.bf16.msra.mxu0 0
    %191 = vmatprep.mubr.bf16.mxu0 0
    %192 = vmatmul.mubr.bf16.gmra.mrb[0].mxu0 %v157
    %v193 = vpop.f32.mrb[0].mxu0
    %v194 = vadd.f32 %v145, %v193
    %v195 = vpop.f32.mrb[0].mxu0
    %v196 = vpop.f32.mrb[0].mxu0
    %v197 = vadd.f32 %v149, %v196
    %v198 = vpop.f32.mrb[0].mxu0
    %199 = vdwg.mxu0
    %v200 = vmax.f32 %v194, 0.0
    %v201 = vmax.f32 %v197, 0.0
    %v202 = vld [vmem:[%s3] sm:$0xf]
    %v203 = vpack.c.bf16 %v201, %v200
    %204 = vset.pattern.permute.xlu0 2
    %205 = vperm.xlu0 %204, %v25
    %v206 = vpop.permute.xlu0 %205
    %vm208 = vcmask 130048
    %v210 = vsel %vm208, %v202, 0
    %212 = vmatprep.subr.bf16.mxu0 0
    %213 = vmatpush1.bf16.msra.mxu0 %v203
    %214 = vmatprep.subr.bf16.mxu0 0
    %215 = vmatpush1.bf16.msra.mxu0 0
    %216 = vmatprep.subr.bf16.mxu0 0
    %217 = vmatpush1.bf16.msra.mxu0 0
    %218 = vmatprep.subr.bf16.mxu0 0
    %219 = vmatpush1.bf16.msra.mxu0 0
    %220 = vmatprep.subr.bf16.mxu0 0
    %221 = vmatpush1.bf16.msra.mxu0 0
    %222 = vmatprep.subr.bf16.mxu0 0
    %223 = vmatpush1.bf16.msra.mxu0 0
    %224 = vmatprep.subr.bf16.mxu0 0
    %225 = vmatpush1.bf16.msra.mxu0 0
    %226 = vmatprep.subr.bf16.mxu0 0
    %227 = vmatpush1.bf16.msra.mxu0 0
    %228 = vmatprep.subr.bf16.mxu0 0
    %229 = vmatpush1.bf16.msra.mxu0 0
    %230 = vmatprep.subr.bf16.mxu0 0
    %231 = vmatpush1.bf16.msra.mxu0 0
    %232 = vmatprep.subr.bf16.mxu0 0
    %233 = vmatpush1.bf16.msra.mxu0 0
    %234 = vmatprep.subr.bf16.mxu0 0
    %235 = vmatpush1.bf16.msra.mxu0 0
    %236 = vmatprep.subr.bf16.mxu0 0
    %237 = vmatpush1.bf16.msra.mxu0 0
    %238 = vmatprep.subr.bf16.mxu0 0
    %239 = vmatpush1.bf16.msra.mxu0 0
    %240 = vmatprep.subr.bf16.mxu0 0
    %241 = vmatpush1.bf16.msra.mxu0 0
    %242 = vmatprep.subr.bf16.mxu0 0
    %243 = vmatpush1.bf16.msra.mxu0 0
    %244 = vmatprep.mubr.bf16.mxu0 0
    %245 = vmatmul.mubr.bf16.gmra.mrb[0].mxu0 %v210
    %v246 = vpop.f32.mrb[0].mxu0
    %v247 = vadd.f32 %v206, %v246
    %v248 = vpop.f32.mrb[0].mxu0
    %v249 = vpop.f32.mrb[0].mxu0
    %v250 = vpop.f32.mrb[0].mxu0
    %251 = vdwg.mxu0
    %v252 = vmax.f32 %v247, 0.0
    %v253 = vld [vmem:[%s4] sm:$0xff]
    %255 = vset.pattern.permute.xlu0 0
    %256 = vperm.xlu0 %255, %v253
    %v257 = vpop.permute.xlu0 %256
    %v259 = vmul.f32 %v252, %v257
    %v260 = vrot.slane %v259, 4
    %v261 = vadd.f32 %v259, %v260
    %v262 = vrot.slane %v261, 2
    %v263 = vadd.f32 %v261, %v262
    %v264 = vrot.slane %v263, 1
    %v265 = vadd.f32 %v263, %v264
    %266 = vset.pattern.permute.xlu0 3
    %267 = vperm.xlu0 %266, %v25
    %v268 = vpop.permute.xlu0 %267
    %v270 = vadd.f32 %v265, %v268
    %271 = vst [vmem:[#allocation2] sm:$0x1] %v270
    // Predicated region
    $region26: #{tpu_custom_call.1} parent=1 // pred_check
      _
    $region27: #{tpu_custom_call.1} parent=1 // pred_check_branch
      %273 = sbr.rel (0) target = $region29
    $region28: #{tpu_custom_call.1} parent=1 // pred_region
      %s275 = ssub.s32 16, 16
      %276 = vsyncadd [#allocation3], %s275
      %s278 = sshll.u32 [#allocation2], 4
      %s279 = int_to_ptr.vmem [resolvable:$true] %s278
      %281 = dma.vmem_to_hbm [thread:$0]  %s279, 16, %s6, [#allocation3]
    $region29: #{tpu_custom_call.1} parent=1 // pred_fallthru
      _
    // Predicated region
    $region30: #{tpu_custom_call.1} parent=1 // pred_check
      _
    $region31: #{tpu_custom_call.1} parent=1 // pred_check_branch
      %283 = sbr.rel (0) target = $region33
    $region32: #{tpu_custom_call.1} parent=1 // pred_region
      %284 = dma.done [#allocation3], 16
    $region33: #{tpu_custom_call.1} parent=1 // pred_fallthru
      _
    %285 = vsyncpa [#allocation3], 1

</llo_original>
